<compile_context>
chip_gen: v6e
topology: v6e:2x2x1
jax: 0.10.0
libtpu: 0.0.40
codegen_flags: <defaults>
</compile_context>

<pallas_src>
import jax
import jax.numpy as jnp
from jax.experimental import pallas as pl
from jax.experimental.pallas import tpu as pltpu

_LANE = 128
_COL_CANDIDATES = (2048, 1024, 512, 256, 128)
_SUBLANE_BY_ITEMSIZE = {4: 8, 2: 16, 1: 32}


def _make_fused_kernel(inv_n):
    """Single pass: compute the mean and subtract on a VMEM-resident slab."""
    def kernel(x_ref, o_ref):
        x32 = x_ref[...].astype(jnp.float32)
        mean = jnp.sum(x32) * inv_n
        o_ref[...] = (x32 - mean).astype(o_ref.dtype)
    return kernel


def _make_partial_sum_kernel(valid_rows, block_rows, need_mask):
    """Per-block partial sum. Output block is a lane-dense (1, 8, 128) slab
    filled with the broadcast scalar partial sum (wrapper picks [i, 0, 0])."""
    def kernel(x_ref, psum_ref):
        x32 = x_ref[...].astype(jnp.float32)
        if need_mask:
            # Last (partial) block: rows past `valid_rows` hold undefined data.
            row0 = pl.program_id(0) * block_rows
            rid = row0 + jax.lax.broadcasted_iota(jnp.int32, x32.shape, 0)
            x32 = jnp.where(rid < valid_rows, x32, 0.0)
        s = jnp.sum(x32)
        psum_ref[...] = jnp.broadcast_to(s, psum_ref.shape)
    return kernel


def _subtract_kernel(mean_ref, x_ref, o_ref):
    # mean_ref: (1, 1) f32 scalar in SMEM. Subtract in f32, cast on store so
    # bf16 results match a higher-precision mean subtraction.
    mean = mean_ref[0, 0]
    o_ref[...] = (x_ref[...].astype(jnp.float32) - mean).astype(o_ref.dtype)


def centered_layer(x, *, target_block_bytes=4 << 20, fused_max_bytes=4 << 20,
                   donate=False):
    """X - X.mean() over all elements (torch CenteredLayer semantics)."""
    orig_shape = x.shape
    orig_dtype = x.dtype
    n = int(x.size)
    if n == 0:
        return x

    itemsize = x.dtype.itemsize
    sublane = _SUBLANE_BY_ITEMSIZE.get(itemsize, 8)

    # Lane-dense 2-D layout. Prefer a cols that divides n exactly so reshape
    # is metadata-only (no pad copy in, no slice copy out).
    cols = next((c for c in _COL_CANDIDATES if n % c == 0), None)
    padded = cols is None
    if padded:
        # Rare fallback (n % 128 != 0): zero-pad to whole rows. Zeros do not
        # perturb the sum (we divide by the true n) and the tail is sliced off.
        cols = 512
        rows = -(-n // cols)
        flat = jnp.pad(x.reshape(-1), (0, rows * cols - n))
        x2d = flat.reshape(rows, cols)
    else:
        rows = n // cols
        x2d = x.reshape(rows, cols)

    slab_bytes = rows * cols * itemsize
    inv_n = 1.0 / n

    if slab_bytes <= fused_max_bytes:
        # ---- Fused single-pass fast path (whole slab as one VMEM block) ----
        out2d = pl.pallas_call(
            _make_fused_kernel(inv_n),
            out_shape=jax.ShapeDtypeStruct(x2d.shape, orig_dtype),
            input_output_aliases=({0: 0} if donate else {}),
            compiler_params=pltpu.CompilerParams(vmem_limit_bytes=32 << 20),
        )(x2d)
    else:
        # ---- Tiled two-pass path ----
        tbb = min(int(target_block_bytes), 8 << 20)
        br_target = max(1, tbb // (cols * itemsize))
        if rows <= max(br_target, sublane):
            block_rows = rows  # single block == full array dims
        else:
            block_rows = max(sublane,
                             (min(rows, br_target) // sublane) * sublane)
        grid_rows = -(-rows // block_rows)
        need_mask = (grid_rows * block_rows != rows)

        block_bytes = block_rows * cols * itemsize
        # Separate per-pass budgets: pass 1 only double-buffers the input;
        # pass 2 double-buffers input + output. Cap at 48 MiB for v7x safety.
        vmem_p1 = int(min(48 << 20, max(16 << 20, 2 * block_bytes + (8 << 20))))
        vmem_p2 = int(min(48 << 20, max(16 << 20, 4 * block_bytes + (8 << 20))))

        block_spec = pl.BlockSpec((block_rows, cols), lambda i: (i, 0))

        # Pass 1: parallel per-block partial sums (both v7x TCs stream).
        partials = pl.pallas_call(
            _make_partial_sum_kernel(rows, block_rows, need_mask),
            out_shape=jax.ShapeDtypeStruct((grid_rows, 8, _LANE), jnp.float32),
            grid=(grid_rows,),
            in_specs=[block_spec],
            out_specs=pl.BlockSpec((1, 8, _LANE), lambda i: (i, 0, 0)),
            compiler_params=pltpu.CompilerParams(
                dimension_semantics=("parallel",),
                vmem_limit_bytes=vmem_p1,
            ),
        )(x2d)
        total = jnp.sum(partials[:, 0, 0])
        mean = (total * jnp.float32(inv_n)).reshape(1, 1)

        # Pass 2: streaming subtract, f32 mean scalar in SMEM.
        out2d = pl.pallas_call(
            _subtract_kernel,
            out_shape=jax.ShapeDtypeStruct(x2d.shape, orig_dtype),
            grid=(grid_rows,),
            in_specs=[
                pl.BlockSpec(memory_space=pltpu.MemorySpace.SMEM),  # mean
                block_spec,                                         # x tiles
            ],
            out_specs=block_spec,
            input_output_aliases=({1: 0} if donate else {}),
            compiler_params=pltpu.CompilerParams(
                dimension_semantics=("parallel",),
                vmem_limit_bytes=vmem_p2,
            ),
        )(mean, x2d)

    if padded:
        return out2d.reshape(-1)[:n].reshape(orig_shape)
    return out2d.reshape(orig_shape)


if __name__ == "__main__":
    key = jax.random.PRNGKey(0)
    k1, k2, k3, k4 = jax.random.split(key, 4)

    # 1) Small example (fused single-pass path).
    x = jax.random.normal(k1, (8, 32), dtype=jnp.float32)
    y = centered_layer(x)
    jax.block_until_ready(y)
    ref = x - jnp.mean(x)
    assert y.shape == x.shape and y.dtype == x.dtype
    assert jnp.allclose(y, ref, atol=1e-6), "mismatch vs reference (small)"
    assert abs(float(jnp.mean(y))) < 1e-5

    # 2) Medium case, no-pad reshape (n % 2048 == 0), still fused path.
    x2 = jax.random.normal(k2, (300, 512), dtype=jnp.float32)
    y2 = centered_layer(x2)
    jax.block_until_ready(y2)
    ref2 = x2 - jnp.mean(x2)
    assert y2.shape == x2.shape and y2.dtype == x2.dtype
    assert jnp.allclose(y2, ref2, atol=1e-4), "mismatch vs reference (fused)"
    assert abs(float(jnp.mean(y2))) < 1e-4

    # 3) Force the tiled two-pass path with a ragged last row-block
    #    (exercises parallel partial sums + masked tail + SMEM mean).
    x3 = jax.random.normal(k3, (100, 384), dtype=jnp.float32)
    y3 = centered_layer(x3, target_block_bytes=64 * 1024, fused_max_bytes=0)
    jax.block_until_ready(y3)
    ref3 = x3 - jnp.mean(x3)
    assert y3.shape == x3.shape and y3.dtype == x3.dtype
    assert jnp.allclose(y3, ref3, atol=1e-4), "mismatch vs reference (tiled)"
    assert abs(float(jnp.mean(y3))) < 1e-4

    # 4) bf16 input through the two-pass path (f32 mean, f32 subtract, cast).
    x4 = jax.random.normal(k4, (64, 256), dtype=jnp.float32).astype(jnp.bfloat16)
    y4 = centered_layer(x4, fused_max_bytes=0)
    jax.block_until_ready(y4)
    x4f = x4.astype(jnp.float32)
    ref4 = (x4f - jnp.mean(x4f)).astype(jnp.bfloat16)
    assert y4.shape == x4.shape and y4.dtype == x4.dtype
    assert jnp.allclose(y4.astype(jnp.float32), ref4.astype(jnp.float32),
                        atol=5e-2), "mismatch vs reference (bf16)"

    print("KERNEL_OK")
</pallas_src>

<mosaic_0001>
module attributes {stable_mosaic.version = 11 : i64} {
  func.func @kernel(%arg0: memref<1x256xf32, #tpu.memory_space<vmem>>, %arg1: memref<1x256xf32, #tpu.memory_space<vmem>>) attributes {dimension_semantics = [], scalar_prefetch = 0 : i64, scratch_operands = 0 : i64, tpu.core_type = #tpu.core_type<tc>} {
    %c0 = arith.constant 0 : index
    %c0_0 = arith.constant 0 : index
    %0 = vector.load %arg0[%c0, %c0_0] : memref<1x256xf32, #tpu.memory_space<vmem>>, vector<1x256xf32>
    %1 = vector.shape_cast %0 : vector<1x256xf32> to vector<1x1x256xf32>
    %cst = arith.constant dense<0.000000e+00> : vector<1xf32>
    %2 = vector.multi_reduction <add>, %1, %cst [1, 2] : vector<1x1x256xf32> to vector<1xf32>
    %3 = vector.shape_cast %2 : vector<1xf32> to vector<1x1x1xf32>
    %4 = vector.extract %3[0, 0, 0] : f32 from vector<1x1x1xf32>
    %cst_1 = arith.constant 3.906250e-03 : f32
    %5 = arith.mulf %4, %cst_1 : f32
    %6 = vector.broadcast %5 : f32 to vector<1x256xf32>
    %7 = arith.subf %0, %6 : vector<1x256xf32>
    %c0_2 = arith.constant 0 : index
    %c0_3 = arith.constant 0 : index
    %8 = vector.load %arg1[%c0_2, %c0_3] : memref<1x256xf32, #tpu.memory_space<vmem>>, vector<1x256xf32>
    tpu.vector_store %arg1[%c0_2, %c0_3], %7 {strides = array<i32>} : memref<1x256xf32, #tpu.memory_space<vmem>>, vector<1x256xf32>,
    return
  }
}

</mosaic_0001>

<llo_original>
// kernel: tpu_custom_call.1
$region0: #{tpu_custom_call.1}
  #allocation0 [shape = 'u32[]', space=smem, size = 0x4, offset = 0x4, fixed_abs, tag = 'smem constant byte address 0x4 - core index']
  #allocation1 [shape = 'u32[144,128]{1,0:T(1,128)}', space=vmem, size = 0x12000, scoped, tag = 'internal scratch']
  %s0 = inlined_call_operand.hbm [shape: f32[1,256], index: 0, kind: input, shape index: {}]
  %s1 = inlined_call_operand.hbm [shape: f32[1,256], index: 1, kind: output, shape index: {}]
  %s2 = sld [smem:[#allocation0]]
  $region18: #{tpu_custom_call.1} parent=0
    _
  %s4 = ssub.s32 1, %s2
  %s5 = scalar_select 0, %s4, %s2
  $region1: #{tpu_custom_call.1} parent=0
    #allocation2 [shape = 'u8[1024]{0}', space=vmem, size = 0x400, scoped, tag = 'input window, operand 0, single buffered']
    #allocation3 [shape = 's32[1]{0}', space=sflag, size = 0x4, scoped, tag = 'scoped memory for tpu_custom_call.1']
    #allocation4 [shape = 's32[1]{0}', space=sflag, size = 0x4, scoped, tag = 'scoped memory for tpu_custom_call.1']
    #allocation5 [shape = 'u8[1024]{0}', space=vmem, size = 0x400, scoped, tag = 'output window, operand 0, single buffered']
    %6 = vsyncpa [#allocation3], 0
    %7 = vsyncpa [#allocation4], 0
    // Predicated region
    $region2: #{tpu_custom_call.1} parent=1 // pred_check
      _
    $region3: #{tpu_custom_call.1} parent=1 // pred_check_branch
      %9 = sbr.rel (0) target = $region5
    $region4: #{tpu_custom_call.1} parent=1 // pred_region
      %s11 = ssub.s32 32, 32
      %12 = vsyncadd [#allocation3], %s11
      %s14 = sshll.u32 [#allocation2], 4
      %s15 = int_to_ptr.vmem [resolvable:$true] %s14
      %17 = dma.hbm_to_vmem [thread:$0]  %s0, 32, %s15, [#allocation3]
    $region5: #{tpu_custom_call.1} parent=1 // pred_fallthru
      _
    // Predicated region
    $region6: #{tpu_custom_call.1} parent=1 // pred_check
      _
    $region7: #{tpu_custom_call.1} parent=1 // pred_check_branch
      %19 = sbr.rel (0) target = $region9
    $region8: #{tpu_custom_call.1} parent=1 // pred_region
      %20 = dma.done [#allocation3], 32
    $region9: #{tpu_custom_call.1} parent=1 // pred_fallthru
      _
    %v21 = vld [vmem:[#allocation2] sm:$0x3]
    %v23 = vlaneseq
    %v24 = vshrl.u32 %v23, 7
    %v25 = vsub.s32 0, %v24
    %v26 = vrot.slane %v21, %v25
    %v27 = vlaneseq
    %v28 = vshrl.u32 %v27, 7
    %v29 = vsub.s32 1, %v28
    %v30 = vrot.slane %v21, %v29
    %vm33 = vcmask 1040384
    %v34 = vsel %vm33, %v26, 0.0
    %v35 = vsel %vm33, %v30, 0.0
    %v36 = vadd.f32 %v34, %v35
    %37 = vadd.xlane.f32.xlu0 %v36
    %v38 = vpop.xlane.xlu0 %37
    %v39 = vrot.slane %v38, 4
    %v40 = vadd.f32 %v38, %v39
    %v41 = vrot.slane %v40, 2
    %v42 = vadd.f32 %v40, %v41
    %v43 = vrot.slane %v42, 1
    %v44 = vadd.f32 %v42, %v43
    %s45 = vtos %v44
    %s46 = smul.f32 %s45, 0.00390625
    %v47 = vstv %s46
    %v48 = vsub.f32 %v21, %v47
    %v49 = vlaneseq
    %vm50 = vcmp.ge.s32.totalorder %v49, 0
    %vm51 = vcmp.lt.s32.totalorder %v49, 256
    %vm52 = vmand %vm50, %vm51
    %53 = vst.msk [vmem:[#allocation5] sm:$0x3] %vm52, %v48
    // Predicated region
    $region10: #{tpu_custom_call.1} parent=1 // pred_check
      _
    $region11: #{tpu_custom_call.1} parent=1 // pred_check_branch
      %55 = sbr.rel (0) target = $region13
    $region12: #{tpu_custom_call.1} parent=1 // pred_region
      %s57 = ssub.s32 32, 32
      %58 = vsyncadd [#allocation4], %s57
      %s60 = sshll.u32 [#allocation5], 4
      %s61 = int_to_ptr.vmem [resolvable:$true] %s60
      %63 = dma.vmem_to_hbm [thread:$0]  %s61, 32, %s1, [#allocation4]
    $region13: #{tpu_custom_call.1} parent=1 // pred_fallthru
      _
    // Predicated region
    $region14: #{tpu_custom_call.1} parent=1 // pred_check
      _
    $region15: #{tpu_custom_call.1} parent=1 // pred_check_branch
      %65 = sbr.rel (0) target = $region17
    $region16: #{tpu_custom_call.1} parent=1 // pred_region
      %66 = dma.done [#allocation4], 32
    $region17: #{tpu_custom_call.1} parent=1 // pred_fallthru
      _
    %67 = vsyncpa [#allocation3], 1
    %68 = vsyncpa [#allocation4], 1

</llo_original>
